<compile_context>
chip_gen: v7x
topology: tpu7x:2x2x1
jax: 0.10.0
libtpu: 0.0.40
codegen_flags: <defaults>
</compile_context>

<pallas_src>
import functools

import jax
import jax.numpy as jnp
from jax.experimental import pallas as pl
from jax.experimental.pallas import tpu as pltpu


def mlp_kernel(x_ref, w1_ref, b1_ref, w2_ref, b2_ref, o_ref):
    # x_ref : (6, TILE) f32 in VMEM, batch on the lane axis.
    # w1_ref: (18,) f32 in SMEM, row-major (in=6, out=3) -> w1[k, j] = w1_ref[3*k + j]
    # b1_ref: (3,)  f32 in SMEM
    # w2_ref: (3,)  f32 in SMEM
    # b2_ref: (1,)  f32 in SMEM
    # o_ref : (1, TILE) f32 in VMEM (lane-dense store)
    def sigmoid(z):
        # Mathematically identical to 1/(1+exp(-z)); one transcendental per neuron.
        return 0.5 * jnp.tanh(0.5 * z) + 0.5

    y = None
    for j in range(3):                                   # hidden units
        h = x_ref[0:1, :] * w1_ref[0 * 3 + j]
        for k in range(1, 6):                            # input features
            h = h + x_ref[k:k + 1, :] * w1_ref[3 * k + j]
        h = sigmoid(h + b1_ref[j])
        contrib = h * w2_ref[j]
        y = contrib if y is None else y + contrib
    o_ref[...] = sigmoid(y + b2_ref[0])


def _round_up(a, b):
    return ((a + b - 1) // b) * b


@functools.partial(jax.jit, static_argnames=("tile_n",))
def mlp_forward(x, w1, b1, w2, b2, *, tile_n=1024):
    """x: (N, 6) f32.  w1: (6, 3), b1: (3,), w2: (3, 1), b2: (1,).  Returns (N, 1) f32."""
    n = x.shape[0]
    tile = min(tile_n, _round_up(max(n, 1), 128))        # lane-aligned batch tile
    n_pad = _round_up(n, tile)

    # Layout plumbing stays OUTSIDE the kernel: batch onto lanes, pad to tile.
    x_t = x.T.astype(jnp.float32)                        # (6, N)
    if n_pad != n:
        x_t = jnp.pad(x_t, ((0, 0), (0, n_pad - n)))     # (6, N_pad)

    # Flatten the 25 parameter scalars for SMEM residence.
    w1f = w1.reshape(-1).astype(jnp.float32)             # (18,) row-major (in, out)
    b1f = b1.reshape(-1).astype(jnp.float32)             # (3,)
    w2f = w2.reshape(-1).astype(jnp.float32)             # (3,)
    b2f = b2.reshape(-1).astype(jnp.float32)             # (1,)

    smem = pl.BlockSpec(memory_space=pltpu.MemorySpace.SMEM)
    out = pl.pallas_call(
        mlp_kernel,
        out_shape=jax.ShapeDtypeStruct((1, n_pad), jnp.float32),
        grid=(n_pad // tile,),
        in_specs=[
            pl.BlockSpec((6, tile), lambda i: (0, i)),   # x tile, lane-dense
            smem, smem, smem, smem,                      # params as SMEM scalars
        ],
        out_specs=pl.BlockSpec((1, tile), lambda i: (0, i)),
        compiler_params=pltpu.CompilerParams(
            dimension_semantics=("parallel",),           # megacore on v7x
        ),
    )(x_t, w1f, b1f, w2f, b2f)

    return out[0, :n].reshape(n, 1)


def init_params(key):
    # Deterministic init mirroring torch.nn.Linear's default:
    # uniform(-1/sqrt(fan_in), 1/sqrt(fan_in)) for both weight and bias.
    k1, k2, k3, k4 = jax.random.split(key, 4)
    bound1 = 1.0 / jnp.sqrt(6.0)
    bound2 = 1.0 / jnp.sqrt(3.0)
    # Weights stored as (in_features, out_features), i.e. transposed vs torch (out, in).
    w1 = jax.random.uniform(k1, (6, 3), jnp.float32, -bound1, bound1)
    b1 = jax.random.uniform(k2, (3,), jnp.float32, -bound1, bound1)
    w2 = jax.random.uniform(k3, (3, 1), jnp.float32, -bound2, bound2)
    b2 = jax.random.uniform(k4, (1,), jnp.float32, -bound2, bound2)
    return w1, b1, w2, b2


if __name__ == "__main__":
    key = jax.random.PRNGKey(0)
    pkey, xkey, xkey2 = jax.random.split(key, 3)
    w1, b1, w2, b2 = init_params(pkey)

    def reference(xv):
        h = jax.nn.sigmoid(xv @ w1 + b1)
        return jax.nn.sigmoid(h @ w2 + b2)

    # Small batch, matching the PyTorch module's (N, 6) input.
    x = jax.random.normal(xkey, (8, 6), dtype=jnp.float32)
    out = jax.block_until_ready(mlp_forward(x, w1, b1, w2, b2))
    assert out.shape == (8, 1)
    assert jnp.allclose(out, reference(x), atol=1e-5), "mismatch vs JAX reference (n=8)"

    # Non-multiple-of-tile batch to exercise the tiled grid + lane padding.
    x2 = jax.random.normal(xkey2, (300, 6), dtype=jnp.float32)
    out2 = jax.block_until_ready(mlp_forward(x2, w1, b1, w2, b2, tile_n=128))
    assert out2.shape == (300, 1)
    assert jnp.allclose(out2, reference(x2), atol=1e-5), "mismatch vs JAX reference (n=300)"

    print("KERNEL_OK")
</pallas_src>

<mosaic_0001>
module attributes {stable_mosaic.version = 11 : i64} {
  func.func @mlp_kernel(%arg0: i32, %arg1: memref<6x128xf32, #tpu.memory_space<vmem>>, %arg2: memref<18xf32, #tpu.memory_space<smem>>, %arg3: memref<3xf32, #tpu.memory_space<smem>>, %arg4: memref<3xf32, #tpu.memory_space<smem>>, %arg5: memref<1xf32, #tpu.memory_space<smem>>, %arg6: memref<1x128xf32, #tpu.memory_space<vmem>>) attributes {dimension_semantics = [#tpu.dimension_semantics<parallel>], iteration_bounds = array<i64: 1>, scalar_prefetch = 0 : i64, scratch_operands = 0 : i64, tpu.core_type = #tpu.core_type<tc>, window_params = [{transform_indices = @transform_0, window_bounds = array<i64: 6, 128>}, {transform_indices = @transform_1, window_bounds = array<i64: 18>}, {transform_indices = @transform_2, window_bounds = array<i64: 3>}, {transform_indices = @transform_3, window_bounds = array<i64: 3>}, {transform_indices = @transform_4, window_bounds = array<i64: 1>}, {transform_indices = @transform_5, window_bounds = array<i64: 1, 128>}]} {
    %c0 = arith.constant 0 : index
    %c0_0 = arith.constant 0 : index
    %0 = vector.load %arg1[%c0, %c0_0] : memref<6x128xf32, #tpu.memory_space<vmem>>, vector<1x128xf32>
    %c0_1 = arith.constant 0 : index
    %1 = memref.load %arg2[%c0_1] : memref<18xf32, #tpu.memory_space<smem>>
    %2 = vector.broadcast %1 : f32 to vector<1x128xf32>
    %3 = arith.mulf %0, %2 : vector<1x128xf32>
    %c1 = arith.constant 1 : index
    %c0_2 = arith.constant 0 : index
    %4 = vector.load %arg1[%c1, %c0_2] : memref<6x128xf32, #tpu.memory_space<vmem>>, vector<1x128xf32>
    %c3 = arith.constant 3 : index
    %5 = memref.load %arg2[%c3] : memref<18xf32, #tpu.memory_space<smem>>
    %6 = vector.broadcast %5 : f32 to vector<1x128xf32>
    %7 = arith.mulf %4, %6 : vector<1x128xf32>
    %8 = arith.addf %3, %7 : vector<1x128xf32>
    %c2 = arith.constant 2 : index
    %c0_3 = arith.constant 0 : index
    %9 = vector.load %arg1[%c2, %c0_3] : memref<6x128xf32, #tpu.memory_space<vmem>>, vector<1x128xf32>
    %c6 = arith.constant 6 : index
    %10 = memref.load %arg2[%c6] : memref<18xf32, #tpu.memory_space<smem>>
    %11 = vector.broadcast %10 : f32 to vector<1x128xf32>
    %12 = arith.mulf %9, %11 : vector<1x128xf32>
    %13 = arith.addf %8, %12 : vector<1x128xf32>
    %c3_4 = arith.constant 3 : index
    %c0_5 = arith.constant 0 : index
    %14 = vector.load %arg1[%c3_4, %c0_5] : memref<6x128xf32, #tpu.memory_space<vmem>>, vector<1x128xf32>
    %c9 = arith.constant 9 : index
    %15 = memref.load %arg2[%c9] : memref<18xf32, #tpu.memory_space<smem>>
    %16 = vector.broadcast %15 : f32 to vector<1x128xf32>
    %17 = arith.mulf %14, %16 : vector<1x128xf32>
    %18 = arith.addf %13, %17 : vector<1x128xf32>
    %c4 = arith.constant 4 : index
    %c0_6 = arith.constant 0 : index
    %19 = vector.load %arg1[%c4, %c0_6] : memref<6x128xf32, #tpu.memory_space<vmem>>, vector<1x128xf32>
    %c12 = arith.constant 12 : index
    %20 = memref.load %arg2[%c12] : memref<18xf32, #tpu.memory_space<smem>>
    %21 = vector.broadcast %20 : f32 to vector<1x128xf32>
    %22 = arith.mulf %19, %21 : vector<1x128xf32>
    %23 = arith.addf %18, %22 : vector<1x128xf32>
    %c5 = arith.constant 5 : index
    %c0_7 = arith.constant 0 : index
    %24 = vector.load %arg1[%c5, %c0_7] : memref<6x128xf32, #tpu.memory_space<vmem>>, vector<1x128xf32>
    %c15 = arith.constant 15 : index
    %25 = memref.load %arg2[%c15] : memref<18xf32, #tpu.memory_space<smem>>
    %26 = vector.broadcast %25 : f32 to vector<1x128xf32>
    %27 = arith.mulf %24, %26 : vector<1x128xf32>
    %28 = arith.addf %23, %27 : vector<1x128xf32>
    %c0_8 = arith.constant 0 : index
    %29 = memref.load %arg3[%c0_8] : memref<3xf32, #tpu.memory_space<smem>>
    %30 = vector.broadcast %29 : f32 to vector<1x128xf32>
    %31 = arith.addf %28, %30 : vector<1x128xf32>
    %cst = arith.constant 5.000000e-01 : f32
    %32 = vector.broadcast %cst : f32 to vector<1x128xf32>
    %33 = arith.mulf %32, %31 : vector<1x128xf32>
    %34 = math.tanh %33 : vector<1x128xf32>
    %cst_9 = arith.constant 5.000000e-01 : f32
    %35 = vector.broadcast %cst_9 : f32 to vector<1x128xf32>
    %36 = arith.mulf %35, %34 : vector<1x128xf32>
    %cst_10 = arith.constant 5.000000e-01 : f32
    %37 = vector.broadcast %cst_10 : f32 to vector<1x128xf32>
    %38 = arith.addf %36, %37 : vector<1x128xf32>
    %c0_11 = arith.constant 0 : index
    %39 = memref.load %arg4[%c0_11] : memref<3xf32, #tpu.memory_space<smem>>
    %40 = vector.broadcast %39 : f32 to vector<1x128xf32>
    %41 = arith.mulf %38, %40 : vector<1x128xf32>
    %c0_12 = arith.constant 0 : index
    %c0_13 = arith.constant 0 : index
    %42 = vector.load %arg1[%c0_12, %c0_13] : memref<6x128xf32, #tpu.memory_space<vmem>>, vector<1x128xf32>
    %c1_14 = arith.constant 1 : index
    %43 = memref.load %arg2[%c1_14] : memref<18xf32, #tpu.memory_space<smem>>
    %44 = vector.broadcast %43 : f32 to vector<1x128xf32>
    %45 = arith.mulf %42, %44 : vector<1x128xf32>
    %c1_15 = arith.constant 1 : index
    %c0_16 = arith.constant 0 : index
    %46 = vector.load %arg1[%c1_15, %c0_16] : memref<6x128xf32, #tpu.memory_space<vmem>>, vector<1x128xf32>
    %c4_17 = arith.constant 4 : index
    %47 = memref.load %arg2[%c4_17] : memref<18xf32, #tpu.memory_space<smem>>
    %48 = vector.broadcast %47 : f32 to vector<1x128xf32>
    %49 = arith.mulf %46, %48 : vector<1x128xf32>
    %50 = arith.addf %45, %49 : vector<1x128xf32>
    %c2_18 = arith.constant 2 : index
    %c0_19 = arith.constant 0 : index
    %51 = vector.load %arg1[%c2_18, %c0_19] : memref<6x128xf32, #tpu.memory_space<vmem>>, vector<1x128xf32>
    %c7 = arith.constant 7 : index
    %52 = memref.load %arg2[%c7] : memref<18xf32, #tpu.memory_space<smem>>
    %53 = vector.broadcast %52 : f32 to vector<1x128xf32>
    %54 = arith.mulf %51, %53 : vector<1x128xf32>
    %55 = arith.addf %50, %54 : vector<1x128xf32>
    %c3_20 = arith.constant 3 : index
    %c0_21 = arith.constant 0 : index
    %56 = vector.load %arg1[%c3_20, %c0_21] : memref<6x128xf32, #tpu.memory_space<vmem>>, vector<1x128xf32>
    %c10 = arith.constant 10 : index
    %57 = memref.load %arg2[%c10] : memref<18xf32, #tpu.memory_space<smem>>
    %58 = vector.broadcast %57 : f32 to vector<1x128xf32>
    %59 = arith.mulf %56, %58 : vector<1x128xf32>
    %60 = arith.addf %55, %59 : vector<1x128xf32>
    %c4_22 = arith.constant 4 : index
    %c0_23 = arith.constant 0 : index
    %61 = vector.load %arg1[%c4_22, %c0_23] : memref<6x128xf32, #tpu.memory_space<vmem>>, vector<1x128xf32>
    %c13 = arith.constant 13 : index
    %62 = memref.load %arg2[%c13] : memref<18xf32, #tpu.memory_space<smem>>
    %63 = vector.broadcast %62 : f32 to vector<1x128xf32>
    %64 = arith.mulf %61, %63 : vector<1x128xf32>
    %65 = arith.addf %60, %64 : vector<1x128xf32>
    %c5_24 = arith.constant 5 : index
    %c0_25 = arith.constant 0 : index
    %66 = vector.load %arg1[%c5_24, %c0_25] : memref<6x128xf32, #tpu.memory_space<vmem>>, vector<1x128xf32>
    %c16 = arith.constant 16 : index
    %67 = memref.load %arg2[%c16] : memref<18xf32, #tpu.memory_space<smem>>
    %68 = vector.broadcast %67 : f32 to vector<1x128xf32>
    %69 = arith.mulf %66, %68 : vector<1x128xf32>
    %70 = arith.addf %65, %69 : vector<1x128xf32>
    %c1_26 = arith.constant 1 : index
    %71 = memref.load %arg3[%c1_26] : memref<3xf32, #tpu.memory_space<smem>>
    %72 = vector.broadcast %71 : f32 to vector<1x128xf32>
    %73 = arith.addf %70, %72 : vector<1x128xf32>
    %cst_27 = arith.constant 5.000000e-01 : f32
    %74 = vector.broadcast %cst_27 : f32 to vector<1x128xf32>
    %75 = arith.mulf %74, %73 : vector<1x128xf32>
    %76 = math.tanh %75 : vector<1x128xf32>
    %cst_28 = arith.constant 5.000000e-01 : f32
    %77 = vector.broadcast %cst_28 : f32 to vector<1x128xf32>
    %78 = arith.mulf %77, %76 : vector<1x128xf32>
    %cst_29 = arith.constant 5.000000e-01 : f32
    %79 = vector.broadcast %cst_29 : f32 to vector<1x128xf32>
    %80 = arith.addf %78, %79 : vector<1x128xf32>
    %c1_30 = arith.constant 1 : index
    %81 = memref.load %arg4[%c1_30] : memref<3xf32, #tpu.memory_space<smem>>
    %82 = vector.broadcast %81 : f32 to vector<1x128xf32>
    %83 = arith.mulf %80, %82 : vector<1x128xf32>
    %84 = arith.addf %41, %83 : vector<1x128xf32>
    %c0_31 = arith.constant 0 : index
    %c0_32 = arith.constant 0 : index
    %85 = vector.load %arg1[%c0_31, %c0_32] : memref<6x128xf32, #tpu.memory_space<vmem>>, vector<1x128xf32>
    %c2_33 = arith.constant 2 : index
    %86 = memref.load %arg2[%c2_33] : memref<18xf32, #tpu.memory_space<smem>>
    %87 = vector.broadcast %86 : f32 to vector<1x128xf32>
    %88 = arith.mulf %85, %87 : vector<1x128xf32>
    %c1_34 = arith.constant 1 : index
    %c0_35 = arith.constant 0 : index
    %89 = vector.load %arg1[%c1_34, %c0_35] : memref<6x128xf32, #tpu.memory_space<vmem>>, vector<1x128xf32>
    %c5_36 = arith.constant 5 : index
    %90 = memref.load %arg2[%c5_36] : memref<18xf32, #tpu.memory_space<smem>>
    %91 = vector.broadcast %90 : f32 to vector<1x128xf32>
    %92 = arith.mulf %89, %91 : vector<1x128xf32>
    %93 = arith.addf %88, %92 : vector<1x128xf32>
    %c2_37 = arith.constant 2 : index
    %c0_38 = arith.constant 0 : index
    %94 = vector.load %arg1[%c2_37, %c0_38] : memref<6x128xf32, #tpu.memory_space<vmem>>, vector<1x128xf32>
    %c8 = arith.constant 8 : index
    %95 = memref.load %arg2[%c8] : memref<18xf32, #tpu.memory_space<smem>>
    %96 = vector.broadcast %95 : f32 to vector<1x128xf32>
    %97 = arith.mulf %94, %96 : vector<1x128xf32>
    %98 = arith.addf %93, %97 : vector<1x128xf32>
    %c3_39 = arith.constant 3 : index
    %c0_40 = arith.constant 0 : index
    %99 = vector.load %arg1[%c3_39, %c0_40] : memref<6x128xf32, #tpu.memory_space<vmem>>, vector<1x128xf32>
    %c11 = arith.constant 11 : index
    %100 = memref.load %arg2[%c11] : memref<18xf32, #tpu.memory_space<smem>>
    %101 = vector.broadcast %100 : f32 to vector<1x128xf32>
    %102 = arith.mulf %99, %101 : vector<1x128xf32>
    %103 = arith.addf %98, %102 : vector<1x128xf32>
    %c4_41 = arith.constant 4 : index
    %c0_42 = arith.constant 0 : index
    %104 = vector.load %arg1[%c4_41, %c0_42] : memref<6x128xf32, #tpu.memory_space<vmem>>, vector<1x128xf32>
    %c14 = arith.constant 14 : index
    %105 = memref.load %arg2[%c14] : memref<18xf32, #tpu.memory_space<smem>>
    %106 = vector.broadcast %105 : f32 to vector<1x128xf32>
    %107 = arith.mulf %104, %106 : vector<1x128xf32>
    %108 = arith.addf %103, %107 : vector<1x128xf32>
    %c5_43 = arith.constant 5 : index
    %c0_44 = arith.constant 0 : index
    %109 = vector.load %arg1[%c5_43, %c0_44] : memref<6x128xf32, #tpu.memory_space<vmem>>, vector<1x128xf32>
    %c17 = arith.constant 17 : index
    %110 = memref.load %arg2[%c17] : memref<18xf32, #tpu.memory_space<smem>>
    %111 = vector.broadcast %110 : f32 to vector<1x128xf32>
    %112 = arith.mulf %109, %111 : vector<1x128xf32>
    %113 = arith.addf %108, %112 : vector<1x128xf32>
    %c2_45 = arith.constant 2 : index
    %114 = memref.load %arg3[%c2_45] : memref<3xf32, #tpu.memory_space<smem>>
    %115 = vector.broadcast %114 : f32 to vector<1x128xf32>
    %116 = arith.addf %113, %115 : vector<1x128xf32>
    %cst_46 = arith.constant 5.000000e-01 : f32
    %117 = vector.broadcast %cst_46 : f32 to vector<1x128xf32>
    %118 = arith.mulf %117, %116 : vector<1x128xf32>
    %119 = math.tanh %118 : vector<1x128xf32>
    %cst_47 = arith.constant 5.000000e-01 : f32
    %120 = vector.broadcast %cst_47 : f32 to vector<1x128xf32>
    %121 = arith.mulf %120, %119 : vector<1x128xf32>
    %cst_48 = arith.constant 5.000000e-01 : f32
    %122 = vector.broadcast %cst_48 : f32 to vector<1x128xf32>
    %123 = arith.addf %121, %122 : vector<1x128xf32>
    %c2_49 = arith.constant 2 : index
    %124 = memref.load %arg4[%c2_49] : memref<3xf32, #tpu.memory_space<smem>>
    %125 = vector.broadcast %124 : f32 to vector<1x128xf32>
    %126 = arith.mulf %123, %125 : vector<1x128xf32>
    %127 = arith.addf %84, %126 : vector<1x128xf32>
    %c0_50 = arith.constant 0 : index
    %128 = memref.load %arg5[%c0_50] : memref<1xf32, #tpu.memory_space<smem>>
    %129 = vector.broadcast %128 : f32 to vector<1x128xf32>
    %130 = arith.addf %127, %129 : vector<1x128xf32>
    %cst_51 = arith.constant 5.000000e-01 : f32
    %131 = vector.broadcast %cst_51 : f32 to vector<1x128xf32>
    %132 = arith.mulf %131, %130 : vector<1x128xf32>
    %133 = math.tanh %132 : vector<1x128xf32>
    %cst_52 = arith.constant 5.000000e-01 : f32
    %134 = vector.broadcast %cst_52 : f32 to vector<1x128xf32>
    %135 = arith.mulf %134, %133 : vector<1x128xf32>
    %cst_53 = arith.constant 5.000000e-01 : f32
    %136 = vector.broadcast %cst_53 : f32 to vector<1x128xf32>
    %137 = arith.addf %135, %136 : vector<1x128xf32>
    %c0_54 = arith.constant 0 : index
    %c0_55 = arith.constant 0 : index
    %138 = vector.load %arg6[%c0_54, %c0_55] : memref<1x128xf32, #tpu.memory_space<vmem>>, vector<1x128xf32>
    tpu.vector_store %arg6[%c0_54, %c0_55], %137 {strides = array<i32>} : memref<1x128xf32, #tpu.memory_space<vmem>>, vector<1x128xf32>,
    return
  }
  func.func @transform_0(%arg0: i32) -> (i32, i32) {
    %c0_i32 = arith.constant 0 : i32
    %c0_i32_0 = arith.constant 0 : i32
    return %c0_i32, %arg0 : i32, i32
  }
  func.func @transform_1(%arg0: i32) -> i32 {
    %c0_i32 = arith.constant 0 : i32
    %c0_i32_0 = arith.constant 0 : i32
    return %c0_i32 : i32
  }
  func.func @transform_2(%arg0: i32) -> i32 {
    %c0_i32 = arith.constant 0 : i32
    %c0_i32_0 = arith.constant 0 : i32
    return %c0_i32 : i32
  }
  func.func @transform_3(%arg0: i32) -> i32 {
    %c0_i32 = arith.constant 0 : i32
    %c0_i32_0 = arith.constant 0 : i32
    return %c0_i32 : i32
  }
  func.func @transform_4(%arg0: i32) -> i32 {
    %c0_i32 = arith.constant 0 : i32
    %c0_i32_0 = arith.constant 0 : i32
    return %c0_i32 : i32
  }
  func.func @transform_5(%arg0: i32) -> (i32, i32) {
    %c0_i32 = arith.constant 0 : i32
    %c0_i32_0 = arith.constant 0 : i32
    return %c0_i32, %arg0 : i32, i32
  }
}

</mosaic_0001>

<llo_original>
// kernel: mlp_forward.1
$region0: #{mlp_forward.1}
  #allocation0 [shape = 'u32[]', space=smem, size = 0x4, offset = 0x4, fixed_abs, tag = 'smem constant byte address 0x4 - core index']
  #allocation1 [shape = 'u32[144,128]{1,0:T(1,128)}', space=vmem, size = 0x12000, scoped, tag = 'internal scratch']
  #allocation2 [shape = 'f32[1]{0:T(128)S(6)}', space=smem, size = 0x200, scoped, tag = 'scoped memory for mlp_forward.1']
  %s0 = inlined_call_operand.vmem [shape: f32[6,128], index: 0, kind: input, shape index: {}]
  %s1 = inlined_call_operand.vmem [shape: f32[18], index: 1, kind: input, shape index: {}]
  %s2 = inlined_call_operand.vmem [shape: f32[3], index: 2, kind: input, shape index: {}]
  %s3 = inlined_call_operand.vmem [shape: f32[3], index: 3, kind: input, shape index: {}]
  %s4 = inlined_call_operand.<no memory space> [shape: f32[1], index: 4, kind: input, shape index: {}]
  %s5 = inlined_call_operand.vmem [shape: f32[1,128], index: 5, kind: output, shape index: {}]
  %s6 = sld [smem:[#allocation0]]
  $region42: #{mlp_forward.1} parent=0
    _
  %s8 = ssub.s32 1, %s6
  %s9 = scalar_select 0, %s8, %s6
  %10 = sst [smem:[#allocation2]] %s4
  $region1: #{mlp_forward.1} parent=0
    #allocation3 [shape = 'u8[512]{0}', space=smem, size = 0x200, scoped, tag = 'input window, operand 1, single buffered']
    #allocation4 [shape = 's32[1]{0}', space=sflag, size = 0x4, scoped, tag = 'scoped memory for mlp_forward.1']
    #allocation5 [shape = 'u8[512]{0}', space=smem, size = 0x200, scoped, tag = 'input window, operand 2, single buffered']
    #allocation6 [shape = 's32[1]{0}', space=sflag, size = 0x4, scoped, tag = 'scoped memory for mlp_forward.1']
    #allocation7 [shape = 'u8[512]{0}', space=smem, size = 0x200, scoped, tag = 'input window, operand 3, single buffered']
    %11 = vsyncpa [#allocation4], 0
    %12 = vsyncpa [#allocation6], 0
    // Predicated region
    $region2: #{mlp_forward.1} parent=1 // pred_check
      _
    $region3: #{mlp_forward.1} parent=1 // pred_check_branch
      %14 = sbr.rel (0) target = $region5
    $region4: #{mlp_forward.1} parent=1 // pred_region
      _
    $region5: #{mlp_forward.1} parent=1 // pred_fallthru
      _
    // Predicated region
    $region6: #{mlp_forward.1} parent=1 // pred_check
      _
    $region7: #{mlp_forward.1} parent=1 // pred_check_branch
      %16 = sbr.rel (0) target = $region9
    $region8: #{mlp_forward.1} parent=1 // pred_region
      %s18 = ssub.s32 16, 16
      %19 = vsyncadd [#allocation4], %s18
      %s21 = sshll.u32 %s1, 4
      %s22 = int_to_ptr.vmem [resolvable:$true] %s21
      %24 = dma.vmem_to_smem %s22, 16, [#allocation3], [#allocation4]
    $region9: #{mlp_forward.1} parent=1 // pred_fallthru
      _
    // Predicated region
    $region10: #{mlp_forward.1} parent=1 // pred_check
      _
    $region11: #{mlp_forward.1} parent=1 // pred_check_branch
      %26 = sbr.rel (0) target = $region13
    $region12: #{mlp_forward.1} parent=1 // pred_region
      %s28 = ssub.s32 16, 16
      %29 = vsyncadd [#allocation6], %s28
      %s31 = sshll.u32 %s2, 4
      %s32 = int_to_ptr.vmem [resolvable:$true] %s31
      %34 = dma.vmem_to_smem %s32, 16, [#allocation5], [#allocation6]
    $region13: #{mlp_forward.1} parent=1 // pred_fallthru
      _
    // Predicated region
    $region14: #{mlp_forward.1} parent=1 // pred_check
      _
    $region15: #{mlp_forward.1} parent=1 // pred_check_branch
      %36 = sbr.rel (0) target = $region17
    $region16: #{mlp_forward.1} parent=1 // pred_region
      %s38 = ssub.s32 16, 16
      %39 = vsyncadd [#allocation6], %s38
      %s41 = sshll.u32 %s3, 4
      %s42 = int_to_ptr.vmem [resolvable:$true] %s41
      %44 = dma.vmem_to_smem %s42, 16, [#allocation7], [#allocation6]
    $region17: #{mlp_forward.1} parent=1 // pred_fallthru
      _
    // Predicated region
    $region18: #{mlp_forward.1} parent=1 // pred_check
      _
    $region19: #{mlp_forward.1} parent=1 // pred_check_branch
      %46 = sbr.rel (0) target = $region21
    $region20: #{mlp_forward.1} parent=1 // pred_region
      _
    $region21: #{mlp_forward.1} parent=1 // pred_fallthru
      _
    // Predicated region
    $region22: #{mlp_forward.1} parent=1 // pred_check
      _
    $region23: #{mlp_forward.1} parent=1 // pred_check_branch
      %48 = sbr.rel (0) target = $region25
    $region24: #{mlp_forward.1} parent=1 // pred_region
      %49 = dma.done [#allocation4], 16
    $region25: #{mlp_forward.1} parent=1 // pred_fallthru
      _
    // Predicated region
    $region26: #{mlp_forward.1} parent=1 // pred_check
      _
    $region27: #{mlp_forward.1} parent=1 // pred_check_branch
      %51 = sbr.rel (0) target = $region29
    $region28: #{mlp_forward.1} parent=1 // pred_region
      %52 = dma.done [#allocation6], 16
    $region29: #{mlp_forward.1} parent=1 // pred_fallthru
      _
    // Predicated region
    $region30: #{mlp_forward.1} parent=1 // pred_check
      _
    $region31: #{mlp_forward.1} parent=1 // pred_check_branch
      %54 = sbr.rel (0) target = $region33
    $region32: #{mlp_forward.1} parent=1 // pred_region
      %55 = dma.done [#allocation6], 16
    $region33: #{mlp_forward.1} parent=1 // pred_fallthru
      _
    %56 = sfence
    %v57 = vld [vmem:[%s0] sm:$0x1]
    %s58 = sld [smem:[#allocation3]]
    %v59 = vstv %s58
    %v60 = vmul.f32 %v57, %v59
    %v61 = vld [vmem:[%s0 + $0x1] sm:$0x1]
    %s62 = sld [smem:[#allocation3 + $0x3]]
    %v63 = vstv %s62
    %v64 = vmul.f32 %v61, %v63
    %v65 = vadd.f32 %v60, %v64
    %v66 = vld [vmem:[%s0 + $0x2] sm:$0x1]
    %s67 = sld [smem:[#allocation3 + $0x6]]
    %v68 = vstv %s67
    %v69 = vmul.f32 %v66, %v68
    %v70 = vadd.f32 %v65, %v69
    %v71 = vld [vmem:[%s0 + $0x3] sm:$0x1]
    %s72 = sld [smem:[#allocation3 + $0x9]]
    %v73 = vstv %s72
    %v74 = vmul.f32 %v71, %v73
    %v75 = vadd.f32 %v70, %v74
    %v76 = vld [vmem:[%s0 + $0x4] sm:$0x1]
    %s77 = sld [smem:[#allocation3 + $0xc]]
    %v78 = vstv %s77
    %v79 = vmul.f32 %v76, %v78
    %v80 = vadd.f32 %v75, %v79
    %v81 = vld [vmem:[%s0 + $0x5] sm:$0x1]
    %s82 = sld [smem:[#allocation3 + $0xf]]
    %v83 = vstv %s82
    %v84 = vmul.f32 %v81, %v83
    %v85 = vadd.f32 %v80, %v84
    %s86 = sld [smem:[#allocation5]]
    %v87 = vstv %s86
    %v88 = vadd.f32 %v85, %v87
    %v89 = vmul.f32 %v88, 0.5
    %v90 = vtanh.pop %v89
    %v91 = vmul.f32 %v90, 0.5
    %v92 = vadd.f32 %v91, 0.5
    %s93 = sld [smem:[#allocation7]]
    %v94 = vstv %s93
    %v95 = vmul.f32 %v92, %v94
    %s96 = sld [smem:[#allocation3 + $0x1]]
    %v97 = vstv %s96
    %v98 = vmul.f32 %v57, %v97
    %s99 = sld [smem:[#allocation3 + $0x4]]
    %v100 = vstv %s99
    %v101 = vmul.f32 %v61, %v100
    %v102 = vadd.f32 %v98, %v101
    %s103 = sld [smem:[#allocation3 + $0x7]]
    %v104 = vstv %s103
    %v105 = vmul.f32 %v66, %v104
    %v106 = vadd.f32 %v102, %v105
    %s107 = sld [smem:[#allocation3 + $0xa]]
    %v108 = vstv %s107
    %v109 = vmul.f32 %v71, %v108
    %v110 = vadd.f32 %v106, %v109
    %s111 = sld [smem:[#allocation3 + $0xd]]
    %v112 = vstv %s111
    %v113 = vmul.f32 %v76, %v112
    %v114 = vadd.f32 %v110, %v113
    %s115 = sld [smem:[#allocation3 + $0x10]]
    %v116 = vstv %s115
    %v117 = vmul.f32 %v81, %v116
    %v118 = vadd.f32 %v114, %v117
    %s119 = sld [smem:[#allocation5 + $0x1]]
    %v120 = vstv %s119
    %v121 = vadd.f32 %v118, %v120
    %v122 = vmul.f32 %v121, 0.5
    %v123 = vtanh.pop %v122
    %v124 = vmul.f32 %v123, 0.5
    %v125 = vadd.f32 %v124, 0.5
    %s126 = sld [smem:[#allocation7 + $0x1]]
    %v127 = vstv %s126
    %v128 = vmul.f32 %v125, %v127
    %v129 = vadd.f32 %v95, %v128
    %s130 = sld [smem:[#allocation3 + $0x2]]
    %v131 = vstv %s130
    %v132 = vmul.f32 %v57, %v131
    %s133 = sld [smem:[#allocation3 + $0x5]]
    %v134 = vstv %s133
    %v135 = vmul.f32 %v61, %v134
    %v136 = vadd.f32 %v132, %v135
    %s137 = sld [smem:[#allocation3 + $0x8]]
    %v138 = vstv %s137
    %v139 = vmul.f32 %v66, %v138
    %v140 = vadd.f32 %v136, %v139
    %s141 = sld [smem:[#allocation3 + $0xb]]
    %v142 = vstv %s141
    %v143 = vmul.f32 %v71, %v142
    %v144 = vadd.f32 %v140, %v143
    %s145 = sld [smem:[#allocation3 + $0xe]]
    %v146 = vstv %s145
    %v147 = vmul.f32 %v76, %v146
    %v148 = vadd.f32 %v144, %v147
    %s149 = sld [smem:[#allocation3 + $0x11]]
    %v150 = vstv %s149
    %v151 = vmul.f32 %v81, %v150
    %v152 = vadd.f32 %v148, %v151
    %s153 = sld [smem:[#allocation5 + $0x2]]
    %v154 = vstv %s153
    %v155 = vadd.f32 %v152, %v154
    %v156 = vmul.f32 %v155, 0.5
    %v157 = vtanh.pop %v156
    %v158 = vmul.f32 %v157, 0.5
    %v159 = vadd.f32 %v158, 0.5
    %s160 = sld [smem:[#allocation7 + $0x2]]
    %v161 = vstv %s160
    %v162 = vmul.f32 %v159, %v161
    %v163 = vadd.f32 %v129, %v162
    %s164 = sld [smem:[#allocation2]]
    %v165 = vstv %s164
    %v166 = vadd.f32 %v163, %v165
    %v167 = vmul.f32 %v166, 0.5
    %v168 = vtanh.pop %v167
    %v169 = vmul.f32 %v168, 0.5
    %v170 = vadd.f32 %v169, 0.5
    %171 = vst [vmem:[%s5] sm:$0x1] %v170
    // Predicated region
    $region34: #{mlp_forward.1} parent=1 // pred_check
      _
    $region35: #{mlp_forward.1} parent=1 // pred_check_branch
      %173 = sbr.rel (0) target = $region37
    $region36: #{mlp_forward.1} parent=1 // pred_region
      _
    $region37: #{mlp_forward.1} parent=1 // pred_fallthru
      _
    // Predicated region
    $region38: #{mlp_forward.1} parent=1 // pred_check
      _
    $region39: #{mlp_forward.1} parent=1 // pred_check_branch
      %175 = sbr.rel (0) target = $region41
    $region40: #{mlp_forward.1} parent=1 // pred_region
      _
    $region41: #{mlp_forward.1} parent=1 // pred_fallthru
      _
    %176 = vsyncpa [#allocation4], 1
    %177 = vsyncpa [#allocation6], 1

</llo_original>
